<compile_context>
chip_gen: v5e
topology: v5e:2x2
jax: 0.10.0
libtpu: 0.0.40
codegen_flags: <defaults>
</compile_context>

<pallas_src>
import functools

import jax
import jax.numpy as jnp
from jax.experimental import pallas as pl
from jax.experimental.pallas import tpu as pltpu

_LANES = 128   # vreg lane width
_SUB = 8       # vreg sublane count


def _round_up(a: int, b: int) -> int:
    return ((a + b - 1) // b) * b


def _pick_max_rows(itemsize: int) -> int:
    """Largest per-input block (in 128-lane rows) that is safe on this chip.

    Budget: 2 inputs x 2 pipeline buffers kept within ~1/4 of physical VMEM,
    and each input block capped at 4 MiB (plenty to hide the ~0.35us/step
    grid overhead on all of v5e / v6e / v7x).
    """
    try:
        vmem_cap = int(pltpu.get_tpu_info().vmem_capacity_bytes)
    except Exception:  # pragma: no cover - conservative fallback
        vmem_cap = 64 << 20
    per_block_budget = min(vmem_cap // 16, 4 << 20)
    rows = per_block_budget // (_LANES * itemsize)
    return max(_SUB, (rows // _SUB) * _SUB)


def _reducible_mse_kernel(x_ref, y_ref, out_ref, acc_ref, *,
                          inv_n, rows_valid, r_blk, needs_row_mask):
    """grid = (batch_blocks, n_chunks); one lane-dense chunk of b_blk images.

    x_ref, y_ref : (b_blk, r_blk, 128) VMEM tiles of the current image chunk
    out_ref      : (b_blk, 8, 128)     per-image loss (broadcast), written on
                                       the images' last chunk only
    acc_ref      : (b_blk, 128)        per-image per-lane partial-sum scratch
    """
    n = pl.program_id(1)

    @pl.when(n == 0)
    def _():
        acc_ref[...] = jnp.zeros_like(acc_ref)

    # TODO(synk): `_loss` is abstract in the PyTorch base class; per-image MSE
    # is the concrete per-image loss implemented here.
    d = x_ref[...].astype(jnp.float32) - y_ref[...].astype(jnp.float32)
    if needs_row_mask:
        # Mask rows past the image end (boundary block OOB reads are garbage).
        row = jax.lax.broadcasted_iota(jnp.int32, d.shape, 1) + n * r_blk
        d = jnp.where(row < rows_valid, d, 0.0)
    # sublane reduction of this chunk -> (b_blk, 128) per-lane partials
    acc_ref[...] += jnp.sum(d * d, axis=1)

    @pl.when(n == pl.num_programs(1) - 1)
    def _():
        loss = jnp.sum(acc_ref[...], axis=1) * inv_n          # (b_blk,)
        out_ref[...] = jnp.broadcast_to(
            loss[:, None, None], out_ref.shape).astype(jnp.float32)


def reducible_loss(x, y, reduction: str = "mean"):
    """Pallas equivalent of ReducibleLoss.forward with a per-image MSE `_loss`.

    x, y: (B, C, H, W). Returns:
      - 'none': (B,) per-image losses (float32)
      - 'sum' : scalar sum over the batch
      - 'mean': scalar mean over the batch
    """
    assert x.ndim == 4, x.shape
    assert y.ndim == 4, y.shape
    assert x.shape == y.shape, (x.shape, y.shape)
    B, C, H, W = x.shape
    N = C * H * W
    itemsize = jnp.dtype(x.dtype).itemsize

    # Lane-dense view of the flattened image: rows of 128 lanes.
    if N % _LANES == 0:
        rows = N // _LANES
        xt = x.reshape(B, rows, _LANES)
        yt = y.reshape(B, rows, _LANES)
    else:
        # TODO(synk): rare ragged-lane path; fuse the flatten+pad into the
        # upstream producer to avoid this extra HBM round trip.
        rows = pl.cdiv(N, _LANES)
        pad = rows * _LANES - N
        xt = jnp.pad(x.reshape(B, N), ((0, 0), (0, pad))).reshape(B, rows, _LANES)
        yt = jnp.pad(y.reshape(B, N), ((0, 0), (0, pad))).reshape(B, rows, _LANES)

    # Balanced chunking: n_chunks first, then the per-chunk row count.
    max_rows = _pick_max_rows(itemsize)
    n_chunks = pl.cdiv(rows, max_rows)
    r_blk = _round_up(pl.cdiv(rows, n_chunks), _SUB)

    # Batch several small images per grid step so each step streams ~MiBs.
    if n_chunks == 1:
        block_budget = max_rows * _LANES * itemsize
        per_img_bytes = r_blk * _LANES * itemsize
        b_blk = int(max(1, min(B, block_budget // max(per_img_bytes, 1))))
    else:
        b_blk = 1
    n_b = pl.cdiv(B, b_blk)

    needs_row_mask = (n_chunks * r_blk) != rows

    kernel = functools.partial(
        _reducible_mse_kernel,
        inv_n=1.0 / float(N),
        rows_valid=rows,
        r_blk=r_blk,
        needs_row_mask=needs_row_mask,
    )

    block_bytes = b_blk * r_blk * _LANES * itemsize
    # 2 inputs x 2 buffers + output/scratch headroom; safe on every generation.
    vmem_limit = int(min(4 * block_bytes + (8 << 20), 48 << 20))
    streamed = 2 * n_b * b_blk * n_chunks * r_blk * _LANES * itemsize

    per = pl.pallas_call(
        kernel,
        grid=(n_b, n_chunks),
        in_specs=[
            pl.BlockSpec((b_blk, r_blk, _LANES), lambda b, n: (b, n, 0)),
            pl.BlockSpec((b_blk, r_blk, _LANES), lambda b, n: (b, n, 0)),
        ],
        out_specs=pl.BlockSpec((b_blk, _SUB, _LANES), lambda b, n: (b, 0, 0)),
        out_shape=jax.ShapeDtypeStruct((B, _SUB, _LANES), jnp.float32),
        scratch_shapes=[pltpu.VMEM((b_blk, _LANES), jnp.float32)],
        compiler_params=pltpu.CompilerParams(
            dimension_semantics=("parallel", "arbitrary"),
            vmem_limit_bytes=vmem_limit,
        ),
        cost_estimate=pl.CostEstimate(
            flops=3 * B * N,
            transcendentals=0,
            bytes_accessed=streamed + B * _SUB * _LANES * 4,
        ),
    )(xt, yt)

    per_image = per[:, 0, 0]  # (B,) per-image losses

    if reduction == "none":
        return per_image
    elif reduction == "sum":
        return jnp.sum(per_image)
    elif reduction == "mean":
        return jnp.mean(per_image)
    else:
        raise ValueError(reduction)


def _reference(x, y, reduction):
    """Pure-JAX reference mirroring the PyTorch semantics exactly."""
    d = x.astype(jnp.float32) - y.astype(jnp.float32)
    per = jnp.mean(d * d, axis=(1, 2, 3))
    if reduction == "none":
        return per
    if reduction == "sum":
        return jnp.sum(per)
    return jnp.mean(per)


if __name__ == "__main__":
    key = jax.random.PRNGKey(0)
    kx, ky = jax.random.split(key)

    # Small canonical case (lane-aligned, single chunk, batched images).
    B, C, H, W = 2, 4, 16, 16
    x = jax.random.normal(kx, (B, C, H, W), dtype=jnp.float32)
    y = jax.random.normal(ky, (B, C, H, W), dtype=jnp.float32)

    for reduction in ("mean", "sum", "none"):
        out = reducible_loss(x, y, reduction=reduction)
        out = jax.block_until_ready(out)
        ref = _reference(x, y, reduction)
        assert jnp.allclose(out, ref, rtol=1e-5, atol=1e-5), (reduction, out, ref)

    # Ragged-row case (rows not a multiple of 8) to exercise in-kernel masking.
    B2, C2, H2, W2 = 3, 3, 16, 8   # N = 384 -> 3 rows of 128 lanes
    x2 = jax.random.normal(kx, (B2, C2, H2, W2), dtype=jnp.float32)
    y2 = jax.random.normal(ky, (B2, C2, H2, W2), dtype=jnp.float32)
    out2 = jax.block_until_ready(reducible_loss(x2, y2, reduction="none"))
    ref2 = _reference(x2, y2, "none")
    assert jnp.allclose(out2, ref2, rtol=1e-5, atol=1e-5), (out2, ref2)

    print("KERNEL_OK")
</pallas_src>

<mosaic_0001>
module attributes {stable_mosaic.version = 11 : i64} {
  func.func @_reducible_mse_kernel(%arg0: i32, %arg1: i32, %arg2: memref<2x8x128xf32, #tpu.memory_space<vmem>>, %arg3: memref<2x8x128xf32, #tpu.memory_space<vmem>>, %arg4: memref<2x8x128xf32, #tpu.memory_space<vmem>>, %arg5: memref<2x128xf32, #tpu.memory_space<vmem>>) attributes {dimension_semantics = [#tpu.dimension_semantics<parallel>, #tpu.dimension_semantics<arbitrary>], iteration_bounds = array<i64: 1, 1>, scalar_prefetch = 0 : i64, scratch_operands = 1 : i64, tpu.core_type = #tpu.core_type<tc>, window_params = [{transform_indices = @transform_0, window_bounds = array<i64: 2, 8, 128>}, {transform_indices = @transform_1, window_bounds = array<i64: 2, 8, 128>}, {transform_indices = @transform_2, window_bounds = array<i64: 2, 8, 128>}]} {
    %c0_i32 = arith.constant 0 : i32
    %0 = arith.cmpi eq, %arg1, %c0_i32 : i32
    %1 = arith.extui %0 : i1 to i32
    %c0_i32_0 = arith.constant 0 : i32
    %2 = arith.cmpi ne, %1, %c0_i32_0 : i32
    scf.if %2 {
      %cst_12 = arith.constant 0.000000e+00 : f32
      %14 = vector.broadcast %cst_12 : f32 to vector<2x128xf32>
      %c0_13 = arith.constant 0 : index
      %c0_14 = arith.constant 0 : index
      %15 = vector.load %arg5[%c0_13, %c0_14] : memref<2x128xf32, #tpu.memory_space<vmem>>, vector<2x128xf32>
      tpu.vector_store %arg5[%c0_13, %c0_14], %14 {strides = array<i32>} : memref<2x128xf32, #tpu.memory_space<vmem>>, vector<2x128xf32>,
    } else {
    }
    %c0 = arith.constant 0 : index
    %c0_1 = arith.constant 0 : index
    %c0_2 = arith.constant 0 : index
    %3 = vector.load %arg2[%c0, %c0_1, %c0_2] : memref<2x8x128xf32, #tpu.memory_space<vmem>>, vector<2x8x128xf32>
    %c0_3 = arith.constant 0 : index
    %c0_4 = arith.constant 0 : index
    %c0_5 = arith.constant 0 : index
    %4 = vector.load %arg3[%c0_3, %c0_4, %c0_5] : memref<2x8x128xf32, #tpu.memory_space<vmem>>, vector<2x8x128xf32>
    %5 = arith.subf %3, %4 : vector<2x8x128xf32>
    %c0_6 = arith.constant 0 : index
    %c0_7 = arith.constant 0 : index
    %6 = vector.load %arg5[%c0_6, %c0_7] : memref<2x128xf32, #tpu.memory_space<vmem>>, vector<2x128xf32>
    %7 = arith.mulf %5, %5 : vector<2x8x128xf32>
    %cst = arith.constant dense<0.000000e+00> : vector<2x128xf32>
    %8 = vector.multi_reduction <add>, %7, %cst [1] : vector<2x8x128xf32> to vector<2x128xf32>
    %9 = arith.addf %6, %8 : vector<2x128xf32>
    %c0_8 = arith.constant 0 : index
    %c0_9 = arith.constant 0 : index
    %10 = vector.load %arg5[%c0_8, %c0_9] : memref<2x128xf32, #tpu.memory_space<vmem>>, vector<2x128xf32>
    tpu.vector_store %arg5[%c0_8, %c0_9], %9 {strides = array<i32>} : memref<2x128xf32, #tpu.memory_space<vmem>>, vector<2x128xf32>,
    %c0_i32_10 = arith.constant 0 : i32
    %11 = arith.cmpi eq, %arg1, %c0_i32_10 : i32
    %12 = arith.extui %11 : i1 to i32
    %c0_i32_11 = arith.constant 0 : i32
    %13 = arith.cmpi ne, %12, %c0_i32_11 : i32
    scf.if %13 {
      %c0_12 = arith.constant 0 : index
      %c0_13 = arith.constant 0 : index
      %14 = vector.load %arg5[%c0_12, %c0_13] : memref<2x128xf32, #tpu.memory_space<vmem>>, vector<2x128xf32>
      %cst_14 = arith.constant dense<0.000000e+00> : vector<2xf32>
      %15 = vector.multi_reduction <add>, %14, %cst_14 [1] : vector<2x128xf32> to vector<2xf32>
      %cst_15 = arith.constant 9.765625E-4 : f32
      %16 = vector.broadcast %cst_15 : f32 to vector<2xf32>
      %17 = arith.mulf %15, %16 : vector<2xf32>
      %18 = vector.shape_cast %17 : vector<2xf32> to vector<2x1x1xf32>
      %19 = vector.shape_cast %18 : vector<2x1x1xf32> to vector<2x1x1xf32>
      %20 = vector.broadcast %19 : vector<2x1x1xf32> to vector<2x8x128xf32>
      %c0_16 = arith.constant 0 : index
      %c0_17 = arith.constant 0 : index
      %c0_18 = arith.constant 0 : index
      %21 = vector.load %arg4[%c0_16, %c0_17, %c0_18] : memref<2x8x128xf32, #tpu.memory_space<vmem>>, vector<2x8x128xf32>
      tpu.vector_store %arg4[%c0_16, %c0_17, %c0_18], %20 {strides = array<i32>} : memref<2x8x128xf32, #tpu.memory_space<vmem>>, vector<2x8x128xf32>,
    } else {
    }
    return
  }
  func.func @transform_0(%arg0: i32, %arg1: i32) -> (i32, i32, i32) {
    %c0_i32 = arith.constant 0 : i32
    %c0_i32_0 = arith.constant 0 : i32
    return %arg0, %arg1, %c0_i32 : i32, i32, i32
  }
  func.func @transform_1(%arg0: i32, %arg1: i32) -> (i32, i32, i32) {
    %c0_i32 = arith.constant 0 : i32
    %c0_i32_0 = arith.constant 0 : i32
    return %arg0, %arg1, %c0_i32 : i32, i32, i32
  }
  func.func @transform_2(%arg0: i32, %arg1: i32) -> (i32, i32, i32) {
    %c0_i32 = arith.constant 0 : i32
    %c0_i32_0 = arith.constant 0 : i32
    %c0_i32_1 = arith.constant 0 : i32
    return %arg0, %c0_i32, %c0_i32_0 : i32, i32, i32
  }
}

</mosaic_0001>

<llo_original>
// kernel: tpu_custom_call.1
$region0: #{tpu_custom_call.1}
  #allocation0 [shape = 'u32[]', space=smem, size = 0x4, offset = 0x4, fixed_abs, tag = 'smem constant byte address 0x4 - core index']
  #allocation1 [shape = 'u32[72,128]{1,0:T(1,128)}', space=vmem, size = 0x9000, scoped, tag = 'internal scratch']
  #allocation2 [shape = 'f32[2,128]{1,0:T(2,128)}', space=vmem, size = 0x400, scoped, tag = 'scratch operand']
  %s0 = inlined_call_operand.hbm [shape: f32[2,8,128], index: 0, kind: input, shape index: {}]
  %s1 = inlined_call_operand.hbm [shape: f32[2,8,128], index: 1, kind: input, shape index: {}]
  %s2 = inlined_call_operand.hbm [shape: f32[2,8,128], index: 2, kind: output, shape index: {}]
  %s3 = sld [smem:[#allocation0]]
  $region34: #{tpu_custom_call.1} parent=0
    _
  %s5 = ssub.s32 1, %s3
  %s6 = scalar_select 0, %s5, %s3
  $region1: #{tpu_custom_call.1} parent=0
    #allocation3 [shape = 'u8[8192]{0}', space=vmem, size = 0x2000, scoped, tag = 'input window, operand 0, single buffered']
    #allocation4 [shape = 's32[1]{0}', space=sflag, size = 0x4, scoped, tag = 'scoped memory for tpu_custom_call.1']
    #allocation5 [shape = 's32[1]{0}', space=sflag, size = 0x4, scoped, tag = 'scoped memory for tpu_custom_call.1']
    #allocation6 [shape = 'u8[8192]{0}', space=vmem, size = 0x2000, scoped, tag = 'input window, operand 1, single buffered']
    #allocation7 [shape = 's32[1]{0}', space=sflag, size = 0x4, scoped, tag = 'scoped memory for tpu_custom_call.1']
    #allocation8 [shape = 'u8[8192]{0}', space=vmem, size = 0x2000, scoped, tag = 'output window, operand 0, single buffered']
    %7 = vsyncpa [#allocation4], 0
    %8 = vsyncpa [#allocation7], 0
    %9 = vsyncpa [#allocation5], 0
    // Predicated region
    $region2: #{tpu_custom_call.1} parent=1 // pred_check
      _
    $region3: #{tpu_custom_call.1} parent=1 // pred_check_branch
      %11 = sbr.rel (0) target = $region5
    $region4: #{tpu_custom_call.1} parent=1 // pred_region
      %13 = vsyncadd [#allocation4], 0
      %s14 = sshll.u32 %s0, 4
      %s15 = int_to_ptr.hbm [resolvable:$true] %s14
      %s16 = sshll.u32 [#allocation3], 4
      %s17 = int_to_ptr.vmem [resolvable:$true] %s16
      %22 = dma.hbm_to_vmem [thread:$0]  %s15, 256, %s17, [#allocation4], 128, 128, 8
    $region5: #{tpu_custom_call.1} parent=1 // pred_fallthru
      _
    // Predicated region
    $region6: #{tpu_custom_call.1} parent=1 // pred_check
      _
    $region7: #{tpu_custom_call.1} parent=1 // pred_check_branch
      %24 = sbr.rel (0) target = $region9
    $region8: #{tpu_custom_call.1} parent=1 // pred_region
      %26 = vsyncadd [#allocation7], 0
      %s27 = sshll.u32 %s1, 4
      %s28 = int_to_ptr.hbm [resolvable:$true] %s27
      %s29 = sshll.u32 [#allocation6], 4
      %s30 = int_to_ptr.vmem [resolvable:$true] %s29
      %35 = dma.hbm_to_vmem [thread:$0]  %s28, 256, %s30, [#allocation7], 128, 128, 8
    $region9: #{tpu_custom_call.1} parent=1 // pred_fallthru
      _
    // Predicated region
    $region10: #{tpu_custom_call.1} parent=1 // pred_check
      _
    $region11: #{tpu_custom_call.1} parent=1 // pred_check_branch
      %37 = sbr.rel (0) target = $region13
    $region12: #{tpu_custom_call.1} parent=1 // pred_region
      %39 = dma.done [#allocation4], 256
    $region13: #{tpu_custom_call.1} parent=1 // pred_fallthru
      _
    // Predicated region
    $region14: #{tpu_custom_call.1} parent=1 // pred_check
      _
    $region15: #{tpu_custom_call.1} parent=1 // pred_check_branch
      %41 = sbr.rel (0) target = $region17
    $region16: #{tpu_custom_call.1} parent=1 // pred_region
      %43 = dma.done [#allocation7], 256
    $region17: #{tpu_custom_call.1} parent=1 // pred_fallthru
      _
    %p44 = scmp.eq.s32.totalorder 0, 0
    // Predicated region
    $region18: #{tpu_custom_call.1} parent=1 // pred_check
      %p45 = pneg %p44
    $region19: #{tpu_custom_call.1} parent=1 // pred_check_branch
      %47 = sbr.rel (%p45) target = $region21
    $region20: #{tpu_custom_call.1} parent=1 // pred_region
      %48 = vst [vmem:[#allocation2] sm:$0x3] 0.0
    $region21: #{tpu_custom_call.1} parent=1 // pred_fallthru
      _
    %v49 = vld [vmem:[#allocation3] sm:$0xff]
    %v50 = vld [vmem:[#allocation3 + $0x8] sm:$0xff]
    %v51 = vld [vmem:[#allocation6] sm:$0xff]
    %v52 = vld [vmem:[#allocation6 + $0x8] sm:$0xff]
    %v53 = vsub.f32 %v49, %v51
    %v54 = vsub.f32 %v50, %v52
    %v55 = vld [vmem:[#allocation2] sm:$0x3]
    %v56 = vmul.f32 %v53, %v53
    %v57 = vmul.f32 %v54, %v54
    %v58 = vrot.slane %v56, 4
    %v59 = vadd.f32 %v56, %v58
    %v60 = vrot.slane %v59, 2
    %v61 = vadd.f32 %v59, %v60
    %v62 = vrot.slane %v61, 1
    %v63 = vadd.f32 %v61, %v62
    %v64 = vrot.slane %v57, 4
    %v65 = vadd.f32 %v57, %v64
    %v66 = vrot.slane %v65, 2
    %v67 = vadd.f32 %v65, %v66
    %v68 = vrot.slane %v67, 1
    %v69 = vadd.f32 %v67, %v68
    %vm72 = vcmask 1041409
    %v73 = vsel %vm72, %v69, %v63
    %v75 = vadd.f32 %v55, %v73
    %76 = vst [vmem:[#allocation2] sm:$0x3] %v75
    // Predicated region
    $region22: #{tpu_custom_call.1} parent=1 // pred_check
      %p77 = pneg %p44
    $region23: #{tpu_custom_call.1} parent=1 // pred_check_branch
      %79 = sbr.rel (%p77) target = $region25
    $region24: #{tpu_custom_call.1} parent=1 // pred_region
      %v80 = vld [vmem:[#allocation2] sm:$0x3]
      %vm81 = vcmask 1041408
      %v82 = vsel %vm81, %v80, 0.0
      %83 = vadd.xlane.f32.xlu0 %v82
      %v84 = vpop.xlane.xlu0 %83
      %v85 = vmul.f32 %v84, 0.0009765625
      %v87 = vperm.slane %v85, 0
      %v88 = vperm.slane %v85, 1
      %91 = vst [vmem:[#allocation8] sm:$0xff] %v87
      %92 = vst [vmem:[#allocation8 + $0x8] sm:$0xff] %v88
    $region25: #{tpu_custom_call.1} parent=1 // pred_fallthru
      _
    // Predicated region
    $region26: #{tpu_custom_call.1} parent=1 // pred_check
      _
    $region27: #{tpu_custom_call.1} parent=1 // pred_check_branch
      %94 = sbr.rel (0) target = $region29
    $region28: #{tpu_custom_call.1} parent=1 // pred_region
      %96 = vsyncadd [#allocation5], 0
      %s97 = sshll.u32 [#allocation8], 4
      %s98 = int_to_ptr.vmem [resolvable:$true] %s97
      %s99 = sshll.u32 %s2, 4
      %s100 = int_to_ptr.hbm [resolvable:$true] %s99
      %105 = dma.vmem_to_hbm [thread:$0]  %s98, 256, %s100, [#allocation5], 128, 128, 8
    $region29: #{tpu_custom_call.1} parent=1 // pred_fallthru
      _
    // Predicated region
    $region30: #{tpu_custom_call.1} parent=1 // pred_check
      _
    $region31: #{tpu_custom_call.1} parent=1 // pred_check_branch
      %107 = sbr.rel (0) target = $region33
    $region32: #{tpu_custom_call.1} parent=1 // pred_region
      %109 = dma.done [#allocation5], 256
    $region33: #{tpu_custom_call.1} parent=1 // pred_fallthru
      _
    %110 = vsyncpa [#allocation4], 1
    %111 = vsyncpa [#allocation7], 1
    %112 = vsyncpa [#allocation5], 1

</llo_original>
